<compile_context>
chip_gen: v7x
topology: tpu7x:2x2x1
jax: 0.10.0
libtpu: 0.0.40
codegen_flags: <defaults>
</compile_context>

<pallas_src>
import functools

import jax
import jax.numpy as jnp
from jax.experimental import pallas as pl
from jax.experimental.pallas import tpu as pltpu


def _round_up(n, m):
    return (n + m - 1) // m * m


def sage_fused_kernel(*refs, layer_meta):
    """All SAGEConv('mean') layers fused in one program.

    refs = (x_ref, a_0, w_0, b_0, ..., a_{L-1}, w_{L-1}, b_{L-1}, o_ref)
      x_ref: [n_src0_p, f0_p]        bf16 padded input features
      a_l:   [n_dst_p, n_src_p]      bf16 padded row-normalized adjacency
      w_l:   [2*f_in_p, f_out_p]     bf16 padded concat weight [W_neigh ; W_self]
      b_l:   [1, f_out_p]            f32  padded bias
      o_ref: [n_dst_last_p, f_last_p] f32 padded output (lane-dense store)
    layer_meta[l] = (right_assoc: bool, apply_relu: bool)   (static)
    """
    x_ref, o_ref = refs[0], refs[-1]
    layer_refs = refs[1:-1]

    h = x_ref[...].astype(jnp.float32)  # running activation, stays on-chip in f32
    for l, (right_assoc, apply_relu) in enumerate(layer_meta):
        a_ref, w_ref, b_ref = layer_refs[3 * l:3 * l + 3]
        a = a_ref[...]                      # bf16 [n_dst_p, n_src_p]
        w = w_ref[...]                      # bf16 [2*f_in_p, f_out_p]
        b = b_ref[...]                      # f32  [1, f_out_p]
        f_in_p = w.shape[0] // 2
        n_dst_p = a.shape[0]

        h_b = h.astype(jnp.bfloat16)        # bf16 MXU operands, f32 accumulation
        h_dst = h_b[:n_dst_p, :]            # DGL block: dst nodes lead the src nodes

        if right_assoc:
            # f_out < f_in: A @ (H @ W_neigh) — multiply the dominant n_dst x n_src
            # matmul by the smaller output width instead of f_in.
            wn, ws = w[:f_in_p, :], w[f_in_p:, :]
            hw = jnp.dot(h_b, wn, preferred_element_type=jnp.float32)
            out = (
                jnp.dot(a, hw.astype(jnp.bfloat16), preferred_element_type=jnp.float32)
                + jnp.dot(h_dst, ws, preferred_element_type=jnp.float32)
                + b
            )
        else:
            # Fused projection: one MXU matmul with K = 2*f_in.
            neigh = jnp.dot(a, h_b, preferred_element_type=jnp.float32)
            cat = jnp.concatenate([neigh.astype(jnp.bfloat16), h_dst], axis=-1)
            out = jnp.dot(cat, w, preferred_element_type=jnp.float32) + b

        if apply_relu:
            out = jnp.maximum(out, 0.0)
        # TODO(synk): nn.Dropout omitted (eval mode / p=0.0) — no RNG-driven masking.
        h = out

    o_ref[...] = h.astype(o_ref.dtype)


def sage_forward(blocks, x, params):
    """SAGE.forward: h = x; for each (layer, block): h = layer(block, h); relu except last.

    blocks[l]: dense row-normalized adjacency [n_dst_l, n_src_l]  (f32)
    params[l]: (w_neigh [f_in, f_out], w_self [f_in, f_out], bias [f_out])  (f32)
    """
    n_layers = len(params)
    assert len(blocks) == n_layers

    node = [x.shape[0]] + [a.shape[0] for a in blocks]        # node count per stage
    feat = [x.shape[1]] + [p[0].shape[1] for p in params]     # feature width per stage
    node_p = [_round_up(n, 8) for n in node]                  # sublane-aligned rows
    feat_p = [_round_up(f, 128) for f in feat]                # lane-dense features

    # Pad + pre-pack operands (bf16 matmul operands, f32 bias). Zero padding is exact:
    # padded A rows/cols and padded W rows/cols contribute nothing to the real slice.
    x_p = jnp.zeros((node_p[0], feat_p[0]), jnp.bfloat16)
    x_p = x_p.at[: node[0], : feat[0]].set(x.astype(jnp.bfloat16))

    flat_inputs = [x_p]
    layer_meta = []
    for l in range(n_layers):
        a = blocks[l]
        w_neigh, w_self, bias = params[l]
        f_in, f_out = feat[l], feat[l + 1]

        a_p = jnp.zeros((node_p[l + 1], node_p[l]), jnp.bfloat16)
        a_p = a_p.at[: node[l + 1], : node[l]].set(a.astype(jnp.bfloat16))

        w_cat = jnp.zeros((2 * feat_p[l], feat_p[l + 1]), jnp.bfloat16)
        w_cat = w_cat.at[:f_in, :f_out].set(w_neigh.astype(jnp.bfloat16))
        w_cat = w_cat.at[feat_p[l]: feat_p[l] + f_in, :f_out].set(
            w_self.astype(jnp.bfloat16))

        b_p = jnp.zeros((1, feat_p[l + 1]), jnp.float32).at[0, :f_out].set(bias)

        flat_inputs += [a_p, w_cat, b_p]
        layer_meta.append((f_out < f_in, l != n_layers - 1))

    kernel = functools.partial(sage_fused_kernel, layer_meta=tuple(layer_meta))
    vmem = pl.BlockSpec(memory_space=pltpu.MemorySpace.VMEM)
    out_p = pl.pallas_call(
        kernel,
        out_shape=jax.ShapeDtypeStruct((node_p[-1], feat_p[-1]), jnp.float32),
        in_specs=[vmem] * len(flat_inputs),
        out_specs=vmem,
        compiler_params=pltpu.CompilerParams(vmem_limit_bytes=32 * 1024 * 1024),
    )(*flat_inputs)
    return out_p[: node[-1], : feat[-1]]


def sage_reference(blocks, x, params, n_layers):
    """Plain-JAX reference mirroring the kernel's math (same bf16 casts, f32 accumulate)."""
    h = x.astype(jnp.float32)
    for l, (a, (wn, ws, b)) in enumerate(zip(blocks, params)):
        f_in, f_out = wn.shape
        a_b = a.astype(jnp.bfloat16)
        h_b = h.astype(jnp.bfloat16)
        h_dst = h_b[: a.shape[0], :]
        wn_b, ws_b = wn.astype(jnp.bfloat16), ws.astype(jnp.bfloat16)
        if f_out < f_in:
            hw = jnp.dot(h_b, wn_b, preferred_element_type=jnp.float32).astype(jnp.bfloat16)
            out = (jnp.dot(a_b, hw, preferred_element_type=jnp.float32)
                   + jnp.dot(h_dst, ws_b, preferred_element_type=jnp.float32) + b)
        else:
            neigh = jnp.dot(a_b, h_b, preferred_element_type=jnp.float32).astype(jnp.bfloat16)
            out = (jnp.dot(neigh, wn_b, preferred_element_type=jnp.float32)
                   + jnp.dot(h_dst, ws_b, preferred_element_type=jnp.float32) + b)
        if l != n_layers - 1:
            out = jnp.maximum(out, 0.0)
        h = out
    return h


def make_block(key, n_dst, n_src):
    """Dense row-normalized adjacency [n_dst, n_src] (mean aggregation weights).

    Note: a self edge is forced per dst node (test-fixture choice to guarantee >=1
    neighbor); DGL would only include self via fc_self unless the graph has self-loops.
    """
    adj = jax.random.bernoulli(key, 0.5, (n_dst, n_src)).astype(jnp.float32)
    adj = adj.at[jnp.arange(n_dst), jnp.arange(n_dst)].set(1.0)
    deg = jnp.sum(adj, axis=1, keepdims=True)
    return adj / deg


def init_sage_params(key, in_feats, n_hidden, n_classes, n_layers):
    """Deterministic init of (W_neigh [f_in,f_out], W_self [f_in,f_out], bias [f_out])."""
    dims = [in_feats] + [n_hidden] * (n_layers - 1) + [n_classes]
    params = []
    for l in range(n_layers):
        f_in, f_out = dims[l], dims[l + 1]
        key, k1, k2 = jax.random.split(key, 3)
        scale = 1.0 / jnp.sqrt(jnp.float32(f_in))
        w_neigh = jax.random.normal(k1, (f_in, f_out), jnp.float32) * scale
        w_self = jax.random.normal(k2, (f_in, f_out), jnp.float32) * scale
        bias = jnp.zeros((f_out,), jnp.float32)
        params.append((w_neigh, w_self, bias))
    return params


if __name__ == "__main__":
    in_feats, n_hidden, n_classes, n_layers = 32, 32, 8, 2
    n_src0, n_dst0, n_dst1 = 16, 8, 4  # layer0: 16->8 nodes, layer1: 8->4 nodes

    root = jax.random.PRNGKey(0)
    k_x, k_b0, k_b1, k_w = jax.random.split(root, 4)

    x = jax.random.normal(k_x, (n_src0, in_feats), jnp.float32)
    blocks = [make_block(k_b0, n_dst0, n_src0), make_block(k_b1, n_dst1, n_dst0)]
    params = init_sage_params(k_w, in_feats, n_hidden, n_classes, n_layers)

    out = sage_forward(blocks, x, params)
    jax.block_until_ready(out)

    ref = sage_reference(blocks, x, params, n_layers)
    assert out.shape == (n_dst1, n_classes), out.shape
    assert jnp.allclose(out, ref, atol=1e-2, rtol=1e-2), float(
        jnp.max(jnp.abs(out - ref)))

    print("KERNEL_OK")
</pallas_src>

<mosaic_0001>
module attributes {stable_mosaic.version = 11 : i64} {
  func.func @sage_fused_kernel(%arg0: memref<16x128xbf16, #tpu.memory_space<vmem>>, %arg1: memref<8x16xbf16, #tpu.memory_space<vmem>>, %arg2: memref<256x128xbf16, #tpu.memory_space<vmem>>, %arg3: memref<1x128xf32, #tpu.memory_space<vmem>>, %arg4: memref<8x8xbf16, #tpu.memory_space<vmem>>, %arg5: memref<256x128xbf16, #tpu.memory_space<vmem>>, %arg6: memref<1x128xf32, #tpu.memory_space<vmem>>, %arg7: memref<8x128xf32, #tpu.memory_space<vmem>>) attributes {dimension_semantics = [], scalar_prefetch = 0 : i64, scratch_operands = 0 : i64, tpu.core_type = #tpu.core_type<tc>} {
    %c0 = arith.constant 0 : index
    %c0_0 = arith.constant 0 : index
    %0 = vector.load %arg0[%c0, %c0_0] : memref<16x128xbf16, #tpu.memory_space<vmem>>, vector<16x128xbf16>
    %1 = arith.extf %0 : vector<16x128xbf16> to vector<16x128xf32>
    %c0_1 = arith.constant 0 : index
    %c0_2 = arith.constant 0 : index
    %2 = vector.load %arg1[%c0_1, %c0_2] : memref<8x16xbf16, #tpu.memory_space<vmem>>, vector<8x16xbf16>
    %c0_3 = arith.constant 0 : index
    %c0_4 = arith.constant 0 : index
    %3 = vector.load %arg2[%c0_3, %c0_4] : memref<256x128xbf16, #tpu.memory_space<vmem>>, vector<256x128xbf16>
    %c0_5 = arith.constant 0 : index
    %c0_6 = arith.constant 0 : index
    %4 = vector.load %arg3[%c0_5, %c0_6] : memref<1x128xf32, #tpu.memory_space<vmem>>, vector<1x128xf32>
    %5 = arith.truncf %1 : vector<16x128xf32> to vector<16x128xbf16>
    %6 = vector.extract_strided_slice %5 {offsets = [0, 0], sizes = [8, 128], strides = [1, 1]} : vector<16x128xbf16> to vector<8x128xbf16>
    %cst = arith.constant dense<0.000000e+00> : vector<8x128xf32>
    %7 = tpu.matmul %2, %5, %cst {dimension_numbers = #tpu.dot_dimension_numbers<[1], [0], [0], [1], [0, 0, 1, 1], [], []>} : vector<8x16xbf16>, vector<16x128xbf16>, vector<8x128xf32> -> vector<8x128xf32>
    %8 = arith.truncf %7 : vector<8x128xf32> to vector<8x128xbf16>
    %9 = tpu.concatenate %8, %6 in 1 : vector<8x128xbf16>, vector<8x128xbf16> -> vector<8x256xbf16>
    %cst_7 = arith.constant dense<0.000000e+00> : vector<8x128xf32>
    %10 = tpu.matmul %9, %3, %cst_7 {dimension_numbers = #tpu.dot_dimension_numbers<[1], [0], [0], [1], [0, 0, 1, 1], [], []>} : vector<8x256xbf16>, vector<256x128xbf16>, vector<8x128xf32> -> vector<8x128xf32>
    %11 = vector.broadcast %4 : vector<1x128xf32> to vector<8x128xf32>
    %12 = arith.addf %10, %11 : vector<8x128xf32>
    %cst_8 = arith.constant 0.000000e+00 : f32
    %13 = vector.broadcast %cst_8 : f32 to vector<8x128xf32>
    %14 = arith.maximumf %12, %13 : vector<8x128xf32>
    %c0_9 = arith.constant 0 : index
    %c0_10 = arith.constant 0 : index
    %15 = vector.load %arg4[%c0_9, %c0_10] : memref<8x8xbf16, #tpu.memory_space<vmem>>, vector<8x8xbf16>
    %c0_11 = arith.constant 0 : index
    %c0_12 = arith.constant 0 : index
    %16 = vector.load %arg5[%c0_11, %c0_12] : memref<256x128xbf16, #tpu.memory_space<vmem>>, vector<256x128xbf16>
    %c0_13 = arith.constant 0 : index
    %c0_14 = arith.constant 0 : index
    %17 = vector.load %arg6[%c0_13, %c0_14] : memref<1x128xf32, #tpu.memory_space<vmem>>, vector<1x128xf32>
    %18 = arith.truncf %14 : vector<8x128xf32> to vector<8x128xbf16>
    %19 = vector.extract_strided_slice %16 {offsets = [0, 0], sizes = [128, 128], strides = [1, 1]} : vector<256x128xbf16> to vector<128x128xbf16>
    %20 = vector.extract_strided_slice %16 {offsets = [128, 0], sizes = [128, 128], strides = [1, 1]} : vector<256x128xbf16> to vector<128x128xbf16>
    %cst_15 = arith.constant dense<0.000000e+00> : vector<8x128xf32>
    %21 = tpu.matmul %18, %19, %cst_15 {dimension_numbers = #tpu.dot_dimension_numbers<[1], [0], [0], [1], [0, 0, 1, 1], [], []>} : vector<8x128xbf16>, vector<128x128xbf16>, vector<8x128xf32> -> vector<8x128xf32>
    %22 = arith.truncf %21 : vector<8x128xf32> to vector<8x128xbf16>
    %cst_16 = arith.constant dense<0.000000e+00> : vector<8x128xf32>
    %23 = tpu.matmul %15, %22, %cst_16 {dimension_numbers = #tpu.dot_dimension_numbers<[1], [0], [0], [1], [0, 0, 1, 1], [], []>} : vector<8x8xbf16>, vector<8x128xbf16>, vector<8x128xf32> -> vector<8x128xf32>
    %cst_17 = arith.constant dense<0.000000e+00> : vector<8x128xf32>
    %24 = tpu.matmul %18, %20, %cst_17 {dimension_numbers = #tpu.dot_dimension_numbers<[1], [0], [0], [1], [0, 0, 1, 1], [], []>} : vector<8x128xbf16>, vector<128x128xbf16>, vector<8x128xf32> -> vector<8x128xf32>
    %25 = arith.addf %23, %24 : vector<8x128xf32>
    %26 = vector.broadcast %17 : vector<1x128xf32> to vector<8x128xf32>
    %27 = arith.addf %25, %26 : vector<8x128xf32>
    %c0_18 = arith.constant 0 : index
    %c0_19 = arith.constant 0 : index
    %28 = vector.load %arg7[%c0_18, %c0_19] : memref<8x128xf32, #tpu.memory_space<vmem>>, vector<8x128xf32>
    tpu.vector_store %arg7[%c0_18, %c0_19], %27 {strides = array<i32>} : memref<8x128xf32, #tpu.memory_space<vmem>>, vector<8x128xf32>,
    return
  }
}

</mosaic_0001>

<llo_original>
// kernel: tpu_custom_call.1
$region0: #{tpu_custom_call.1}
  #allocation0 [shape = 'u32[]', space=smem, size = 0x4, offset = 0x4, fixed_abs, tag = 'smem constant byte address 0x4 - core index']
  #allocation1 [shape = 'u32[144,128]{1,0:T(1,128)}', space=vmem, size = 0x12000, scoped, tag = 'internal scratch']
  %s0 = inlined_call_operand.hbm [shape: bf16[16,128], index: 0, kind: input, shape index: {}]
  %s1 = inlined_call_operand.hbm [shape: bf16[8,16], index: 1, kind: input, shape index: {}]
  %s2 = inlined_call_operand.hbm [shape: bf16[256,128], index: 2, kind: input, shape index: {}]
  %s3 = inlined_call_operand.vmem [shape: f32[1,128], index: 3, kind: input, shape index: {}]
  %s4 = inlined_call_operand.vmem [shape: bf16[8,8], index: 4, kind: input, shape index: {}]
  %s5 = inlined_call_operand.hbm [shape: bf16[256,128], index: 5, kind: input, shape index: {}]
  %s6 = inlined_call_operand.vmem [shape: f32[1,128], index: 6, kind: input, shape index: {}]
  %s7 = inlined_call_operand.hbm [shape: f32[8,128], index: 7, kind: output, shape index: {}]
  %s8 = sld [smem:[#allocation0]]
  $region54: #{tpu_custom_call.1} parent=0
    _
  %s10 = ssub.s32 1, %s8
  %s11 = scalar_select 0, %s10, %s8
  $region1: #{tpu_custom_call.1} parent=0
    #allocation2 [shape = 'u8[4096]{0}', space=vmem, size = 0x1000, scoped, tag = 'input window, operand 0, single buffered']
    #allocation3 [shape = 's32[1]{0}', space=sflag, size = 0x4, scoped, tag = 'scoped memory for tpu_custom_call.1']
    #allocation4 [shape = 's32[1]{0}', space=sflag, size = 0x4, scoped, tag = 'scoped memory for tpu_custom_call.1']
    #allocation5 [shape = 'u8[2048]{0}', space=vmem, size = 0x800, scoped, tag = 'input window, operand 1, single buffered']
    #allocation6 [shape = 's32[1]{0}', space=sflag, size = 0x4, scoped, tag = 'scoped memory for tpu_custom_call.1']
    #allocation7 [shape = 'u8[65536]{0}', space=vmem, size = 0x10000, scoped, tag = 'input window, operand 2, single buffered']
    #allocation8 [shape = 'u8[65536]{0}', space=vmem, size = 0x10000, scoped, tag = 'input window, operand 5, single buffered']
    #allocation9 [shape = 's32[1]{0}', space=sflag, size = 0x4, scoped, tag = 'scoped memory for tpu_custom_call.1']
    #allocation10 [shape = 'u8[4096]{0}', space=vmem, size = 0x1000, scoped, tag = 'output window, operand 0, single buffered']
    %12 = vsyncpa [#allocation3], 0
    %13 = vsyncpa [#allocation6], 0
    %14 = vsyncpa [#allocation9], 0
    %15 = vsyncpa [#allocation4], 0
    // Predicated region
    $region2: #{tpu_custom_call.1} parent=1 // pred_check
      _
    $region3: #{tpu_custom_call.1} parent=1 // pred_check_branch
      %17 = sbr.rel (0) target = $region5
    $region4: #{tpu_custom_call.1} parent=1 // pred_region
      %s19 = ssub.s32 128, 128
      %20 = vsyncadd [#allocation3], %s19
      %s21 = sshll.u32 [#allocation2], 4
      %s22 = int_to_ptr.vmem [resolvable:$true] %s21
      %27 = dma.hbm_to_vmem [thread:$0]  %s0, 128, %s22, [#allocation3], 64, 64, 4
    $region5: #{tpu_custom_call.1} parent=1 // pred_fallthru
      _
    // Predicated region
    $region6: #{tpu_custom_call.1} parent=1 // pred_check
      _
    $region7: #{tpu_custom_call.1} parent=1 // pred_check_branch
      %29 = sbr.rel (0) target = $region9
    $region8: #{tpu_custom_call.1} parent=1 // pred_region
      %s31 = ssub.s32 64, 64
      %32 = vsyncadd [#allocation6], %s31
      %s34 = sshll.u32 [#allocation5], 4
      %s35 = int_to_ptr.vmem [resolvable:$true] %s34
      %37 = dma.hbm_to_vmem [thread:$0]  %s1, 64, %s35, [#allocation6]
    $region9: #{tpu_custom_call.1} parent=1 // pred_fallthru
      _
    // Predicated region
    $region10: #{tpu_custom_call.1} parent=1 // pred_check
      _
    $region11: #{tpu_custom_call.1} parent=1 // pred_check_branch
      %39 = sbr.rel (0) target = $region13
    $region12: #{tpu_custom_call.1} parent=1 // pred_region
      %s41 = ssub.s32 2048, 2048
      %42 = vsyncadd [#allocation6], %s41
      %s43 = sshll.u32 [#allocation7], 4
      %s44 = int_to_ptr.vmem [resolvable:$true] %s43
      %49 = dma.hbm_to_vmem [thread:$0]  %s2, 2048, %s44, [#allocation6], 64, 64, 4
    $region13: #{tpu_custom_call.1} parent=1 // pred_fallthru
      _
    // Predicated region
    $region14: #{tpu_custom_call.1} parent=1 // pred_check
      _
    $region15: #{tpu_custom_call.1} parent=1 // pred_check_branch
      %51 = sbr.rel (0) target = $region17
    $region16: #{tpu_custom_call.1} parent=1 // pred_region
      _
    $region17: #{tpu_custom_call.1} parent=1 // pred_fallthru
      _
    // Predicated region
    $region18: #{tpu_custom_call.1} parent=1 // pred_check
      _
    $region19: #{tpu_custom_call.1} parent=1 // pred_check_branch
      %53 = sbr.rel (0) target = $region21
    $region20: #{tpu_custom_call.1} parent=1 // pred_region
      _
    $region21: #{tpu_custom_call.1} parent=1 // pred_fallthru
      _
    // Predicated region
    $region22: #{tpu_custom_call.1} parent=1 // pred_check
      _
    $region23: #{tpu_custom_call.1} parent=1 // pred_check_branch
      %55 = sbr.rel (0) target = $region25
    $region24: #{tpu_custom_call.1} parent=1 // pred_region
      %s57 = ssub.s32 2048, 2048
      %58 = vsyncadd [#allocation9], %s57
      %s59 = sshll.u32 [#allocation8], 4
      %s60 = int_to_ptr.vmem [resolvable:$true] %s59
      %65 = dma.hbm_to_vmem [thread:$0]  %s5, 2048, %s60, [#allocation9], 64, 64, 4
    $region25: #{tpu_custom_call.1} parent=1 // pred_fallthru
      _
    // Predicated region
    $region26: #{tpu_custom_call.1} parent=1 // pred_check
      _
    $region27: #{tpu_custom_call.1} parent=1 // pred_check_branch
      %67 = sbr.rel (0) target = $region29
    $region28: #{tpu_custom_call.1} parent=1 // pred_region
      _
    $region29: #{tpu_custom_call.1} parent=1 // pred_fallthru
      _
    // Predicated region
    $region30: #{tpu_custom_call.1} parent=1 // pred_check
      _
    $region31: #{tpu_custom_call.1} parent=1 // pred_check_branch
      %69 = sbr.rel (0) target = $region33
    $region32: #{tpu_custom_call.1} parent=1 // pred_region
      %70 = dma.done [#allocation3], 128
    $region33: #{tpu_custom_call.1} parent=1 // pred_fallthru
      _
    // Predicated region
    $region34: #{tpu_custom_call.1} parent=1 // pred_check
      _
    $region35: #{tpu_custom_call.1} parent=1 // pred_check_branch
      %72 = sbr.rel (0) target = $region37
    $region36: #{tpu_custom_call.1} parent=1 // pred_region
      %73 = dma.done [#allocation6], 64
    $region37: #{tpu_custom_call.1} parent=1 // pred_fallthru
      _
    // Predicated region
    $region38: #{tpu_custom_call.1} parent=1 // pred_check
      _
    $region39: #{tpu_custom_call.1} parent=1 // pred_check_branch
      %75 = sbr.rel (0) target = $region41
    $region40: #{tpu_custom_call.1} parent=1 // pred_region
      %76 = dma.done [#allocation6], 2048
    $region41: #{tpu_custom_call.1} parent=1 // pred_fallthru
      _
    // Predicated region
    $region42: #{tpu_custom_call.1} parent=1 // pred_check
      _
    $region43: #{tpu_custom_call.1} parent=1 // pred_check_branch
      %78 = sbr.rel (0) target = $region45
    $region44: #{tpu_custom_call.1} parent=1 // pred_region
      %79 = dma.done [#allocation9], 2048
    $region45: #{tpu_custom_call.1} parent=1 // pred_fallthru
      _
    %v81 = vld [vmem:[#allocation2] sm:$0xf]
    %v82 = vld [vmem:[#allocation2 + $0x4] sm:$0xf]
    %v83 = vld [vmem:[#allocation5] sm:$0xf]
    %v84 = vld [vmem:[#allocation7] sm:$0xf]
    %v85 = vld [vmem:[#allocation7 + $0x4] sm:$0xf]
    %v86 = vld [vmem:[#allocation7 + $0x8] sm:$0xf]
    %v87 = vld [vmem:[#allocation7 + $0xc] sm:$0xf]
    %v88 = vld [vmem:[#allocation7 + $0x10] sm:$0xf]
    %v89 = vld [vmem:[#allocation7 + $0x14] sm:$0xf]
    %v90 = vld [vmem:[#allocation7 + $0x18] sm:$0xf]
    %v91 = vld [vmem:[#allocation7 + $0x1c] sm:$0xf]
    %v92 = vld [vmem:[#allocation7 + $0x20] sm:$0xf]
    %v93 = vld [vmem:[#allocation7 + $0x24] sm:$0xf]
    %v94 = vld [vmem:[#allocation7 + $0x28] sm:$0xf]
    %v95 = vld [vmem:[#allocation7 + $0x2c] sm:$0xf]
    %v96 = vld [vmem:[#allocation7 + $0x30] sm:$0xf]
    %v97 = vld [vmem:[#allocation7 + $0x34] sm:$0xf]
    %v98 = vld [vmem:[#allocation7 + $0x38] sm:$0xf]
    %v99 = vld [vmem:[#allocation7 + $0x3c] sm:$0xf]
    %v100 = vld [vmem:[#allocation7 + $0x40] sm:$0xf]
    %v101 = vld [vmem:[#allocation7 + $0x44] sm:$0xf]
    %v102 = vld [vmem:[#allocation7 + $0x48] sm:$0xf]
    %v103 = vld [vmem:[#allocation7 + $0x4c] sm:$0xf]
    %v104 = vld [vmem:[#allocation7 + $0x50] sm:$0xf]
    %v105 = vld [vmem:[#allocation7 + $0x54] sm:$0xf]
    %v106 = vld [vmem:[#allocation7 + $0x58] sm:$0xf]
    %v107 = vld [vmem:[#allocation7 + $0x5c] sm:$0xf]
    %v108 = vld [vmem:[#allocation7 + $0x60] sm:$0xf]
    %v109 = vld [vmem:[#allocation7 + $0x64] sm:$0xf]
    %v110 = vld [vmem:[#allocation7 + $0x68] sm:$0xf]
    %v111 = vld [vmem:[#allocation7 + $0x6c] sm:$0xf]
    %v112 = vld [vmem:[#allocation7 + $0x70] sm:$0xf]
    %v113 = vld [vmem:[#allocation7 + $0x74] sm:$0xf]
    %v114 = vld [vmem:[#allocation7 + $0x78] sm:$0xf]
    %v115 = vld [vmem:[#allocation7 + $0x7c] sm:$0xf]
    %v116 = vld [vmem:[%s3] sm:$0x1]
    %v119 = vunpack.c.l.b16 %v81
    %v120 = vunpack.c.l.b16 %v82
    %v121 = vpack.c.b16 %v120, %v119
    %vm123 = vcmask 130048
    %v125 = vsel %vm123, %v83, 0
    %127 = vmatprep.subr.bf16.mxu0 0
    %128 = vmatpush1.bf16.msra.mxu0 %v121
    %129 = vmatprep.subr.bf16.mxu0 0
    %130 = vmatpush1.bf16.msra.mxu0 0
    %131 = vmatprep.subr.bf16.mxu0 0
    %132 = vmatpush1.bf16.msra.mxu0 0
    %133 = vmatprep.subr.bf16.mxu0 0
    %134 = vmatpush1.bf16.msra.mxu0 0
    %135 = vmatprep.subr.bf16.mxu0 0
    %136 = vmatpush1.bf16.msra.mxu0 0
    %137 = vmatprep.subr.bf16.mxu0 0
    %138 = vmatpush1.bf16.msra.mxu0 0
    %139 = vmatprep.subr.bf16.mxu0 0
    %140 = vmatpush1.bf16.msra.mxu0 0
    %141 = vmatprep.subr.bf16.mxu0 0
    %142 = vmatpush1.bf16.msra.mxu0 0
    %143 = vmatprep.subr.bf16.mxu0 0
    %144 = vmatpush1.bf16.msra.mxu0 0
    %145 = vmatprep.subr.bf16.mxu0 0
    %146 = vmatpush1.bf16.msra.mxu0 0
    %147 = vmatprep.subr.bf16.mxu0 0
    %148 = vmatpush1.bf16.msra.mxu0 0
    %149 = vmatprep.subr.bf16.mxu0 0
    %150 = vmatpush1.bf16.msra.mxu0 0
    %151 = vmatprep.subr.bf16.mxu0 0
    %152 = vmatpush1.bf16.msra.mxu0 0
    %153 = vmatprep.subr.bf16.mxu0 0
    %154 = vmatpush1.bf16.msra.mxu0 0
    %155 = vmatprep.subr.bf16.mxu0 0
    %156 = vmatpush1.bf16.msra.mxu0 0
    %157 = vmatprep.subr.bf16.mxu0 0
    %158 = vmatpush1.bf16.msra.mxu0 0
    %159 = vmatprep.mubr.bf16.mxu0 0
    %160 = vmatmul.mubr.bf16.gmra.mrb[0].mxu0 %v125
    %v161 = vpop.f32.mrb[0].mxu0
    %v162 = vadd.f32 0.0, %v161
    %v163 = vpop.f32.mrb[0].mxu0
    %v164 = vpop.f32.mrb[0].mxu0
    %v165 = vpop.f32.mrb[0].mxu0
    %166 = vdwg.mxu0
    %v167 = vpack.c.bf16 %v162, %v162
    %v169 = vlaneseq
    %v170 = vshrl.u32 %v169, 7
    %v171 = vsub.s32 0, %v170
    %v172 = vrot.slane %v116, %v171
    %v206 = vunpack.c.l.b16 %v84
    %v207 = vunpack.c.l.b16 %v85
    %v208 = vunpack.c.l.b16 %v86
    %v209 = vunpack.c.l.b16 %v87
    %v210 = vunpack.c.l.b16 %v88
    %v211 = vunpack.c.l.b16 %v89
    %v212 = vunpack.c.l.b16 %v90
    %v213 = vunpack.c.l.b16 %v91
    %v214 = vunpack.c.l.b16 %v92
    %v215 = vunpack.c.l.b16 %v93
    %v216 = vunpack.c.l.b16 %v94
    %v217 = vunpack.c.l.b16 %v95
    %v218 = vunpack.c.l.b16 %v96
    %v219 = vunpack.c.l.b16 %v97
    %v220 = vunpack.c.l.b16 %v98
    %v221 = vunpack.c.l.b16 %v99
    %v222 = vunpack.c.l.b16 %v100
    %v223 = vunpack.c.l.b16 %v101
    %v224 = vunpack.c.l.b16 %v102
    %v225 = vunpack.c.l.b16 %v103
    %v226 = vunpack.c.l.b16 %v104
    %v227 = vunpack.c.l.b16 %v105
    %v228 = vunpack.c.l.b16 %v106
    %v229 = vunpack.c.l.b16 %v107
    %v230 = vunpack.c.l.b16 %v108
    %v231 = vunpack.c.l.b16 %v109
    %v232 = vunpack.c.l.b16 %v110
    %v233 = vunpack.c.l.b16 %v111
    %v234 = vunpack.c.l.b16 %v112
    %v235 = vunpack.c.l.b16 %v113
    %v236 = vunpack.c.l.b16 %v114
    %v237 = vunpack.c.l.b16 %v115
    %v238 = vpack.c.b16 %v207, %v206
    %v239 = vpack.c.b16 %v209, %v208
    %v240 = vpack.c.b16 %v211, %v210
    %v241 = vpack.c.b16 %v213, %v212
    %v242 = vpack.c.b16 %v215, %v214
    %v243 = vpack.c.b16 %v217, %v216
    %v244 = vpack.c.b16 %v219, %v218
    %v245 = vpack.c.b16 %v221, %v220
    %v246 = vpack.c.b16 %v223, %v222
    %v247 = vpack.c.b16 %v225, %v224
    %v248 = vpack.c.b16 %v227, %v226
    %v249 = vpack.c.b16 %v229, %v228
    %v250 = vpack.c.b16 %v231, %v230
    %v251 = vpack.c.b16 %v233, %v232
    %v252 = vpack.c.b16 %v235, %v234
    %v253 = vpack.c.b16 %v237, %v236
    %270 = vmatprep.subr.bf16.mxu0 0
    %271 = vmatpush1.bf16.msra.mxu0 %v238
    %272 = vmatprep.subr.bf16.mxu0 0
    %273 = vmatpush1.bf16.msra.mxu0 %v239
    %274 = vmatprep.subr.bf16.mxu0 0
    %275 = vmatpush1.bf16.msra.mxu0 %v240
    %276 = vmatprep.subr.bf16.mxu0 0
    %277 = vmatpush1.bf16.msra.mxu0 %v241
    %278 = vmatprep.subr.bf16.mxu0 0
    %279 = vmatpush1.bf16.msra.mxu0 %v242
    %280 = vmatprep.subr.bf16.mxu0 0
    %281 = vmatpush1.bf16.msra.mxu0 %v243
    %282 = vmatprep.subr.bf16.mxu0 0
    %283 = vmatpush1.bf16.msra.mxu0 %v244
    %284 = vmatprep.subr.bf16.mxu0 0
    %285 = vmatpush1.bf16.msra.mxu0 %v245
    %286 = vmatprep.subr.bf16.mxu0 0
    %287 = vmatpush1.bf16.msra.mxu0 %v246
    %288 = vmatprep.subr.bf16.mxu0 0
    %289 = vmatpush1.bf16.msra.mxu0 %v247
    %290 = vmatprep.subr.bf16.mxu0 0
    %291 = vmatpush1.bf16.msra.mxu0 %v248
    %292 = vmatprep.subr.bf16.mxu0 0
    %293 = vmatpush1.bf16.msra.mxu0 %v249
    %294 = vmatprep.subr.bf16.mxu0 0
    %295 = vmatpush1.bf16.msra.mxu0 %v250
    %296 = vmatprep.subr.bf16.mxu0 0
    %297 = vmatpush1.bf16.msra.mxu0 %v251
    %298 = vmatprep.subr.bf16.mxu0 0
    %299 = vmatpush1.bf16.msra.mxu0 %v252
    %300 = vmatprep.subr.bf16.mxu0 0
    %301 = vmatpush1.bf16.msra.mxu0 %v253
    %302 = vmatprep.mubr.bf16.mxu0 %v81
    %303 = vmatmul.mubr.bf16.gmra.mrb[0].mxu0 %v167
    %v304 = vpop.f32.mrb[0].mxu0
    %v305 = vadd.f32 %v172, %v304
    %v306 = vpop.f32.mrb[0].mxu0
    %v307 = vpop.f32.mrb[0].mxu0
    %v308 = vpop.f32.mrb[0].mxu0
    %309 = vdwg.mxu0
    %v310 = vmax.f32 %v305, 0.0
    %v311 = vld [vmem:[%s4] sm:$0xf]
    %v312 = vld [vmem:[#allocation8] sm:$0xf]
    %v313 = vld [vmem:[#allocation8 + $0x4] sm:$0xf]
    %v314 = vld [vmem:[#allocation8 + $0x8] sm:$0xf]
    %v315 = vld [vmem:[#allocation8 + $0xc] sm:$0xf]
    %v316 = vld [vmem:[#allocation8 + $0x10] sm:$0xf]
    %v317 = vld [vmem:[#allocation8 + $0x14] sm:$0xf]
    %v318 = vld [vmem:[#allocation8 + $0x18] sm:$0xf]
    %v319 = vld [vmem:[#allocation8 + $0x1c] sm:$0xf]
    %v320 = vld [vmem:[#allocation8 + $0x20] sm:$0xf]
    %v321 = vld [vmem:[#allocation8 + $0x24] sm:$0xf]
    %v322 = vld [vmem:[#allocation8 + $0x28] sm:$0xf]
    %v323 = vld [vmem:[#allocation8 + $0x2c] sm:$0xf]
    %v324 = vld [vmem:[#allocation8 + $0x30] sm:$0xf]
    %v325 = vld [vmem:[#allocation8 + $0x34] sm:$0xf]
    %v326 = vld [vmem:[#allocation8 + $0x38] sm:$0xf]
    %v327 = vld [vmem:[#allocation8 + $0x3c] sm:$0xf]
    %v328 = vld [vmem:[#allocation8 + $0x40] sm:$0xf]
    %v329 = vld [vmem:[#allocation8 + $0x44] sm:$0xf]
    %v330 = vld [vmem:[#allocation8 + $0x48] sm:$0xf]
    %v331 = vld [vmem:[#allocation8 + $0x4c] sm:$0xf]
    %v332 = vld [vmem:[#allocation8 + $0x50] sm:$0xf]
    %v333 = vld [vmem:[#allocation8 + $0x54] sm:$0xf]
    %v334 = vld [vmem:[#allocation8 + $0x58] sm:$0xf]
    %v335 = vld [vmem:[#allocation8 + $0x5c] sm:$0xf]
    %v336 = vld [vmem:[#allocation8 + $0x60] sm:$0xf]
    %v337 = vld [vmem:[#allocation8 + $0x64] sm:$0xf]
    %v338 = vld [vmem:[#allocation8 + $0x68] sm:$0xf]
    %v339 = vld [vmem:[#allocation8 + $0x6c] sm:$0xf]
    %v340 = vld [vmem:[#allocation8 + $0x70] sm:$0xf]
    %v341 = vld [vmem:[#allocation8 + $0x74] sm:$0xf]
    %v342 = vld [vmem:[#allocation8 + $0x78] sm:$0xf]
    %v343 = vld [vmem:[#allocation8 + $0x7c] sm:$0xf]
    %v344 = vld [vmem:[%s6] sm:$0x1]
    %v345 = vpack.c.bf16 %v310, %v310
    %v362 = vunpack.c.l.b16 %v312
    %v363 = vunpack.c.l.b16 %v313
    %v364 = vunpack.c.l.b16 %v314
    %v365 = vunpack.c.l.b16 %v315
    %v366 = vunpack.c.l.b16 %v316
    %v367 = vunpack.c.l.b16 %v317
    %v368 = vunpack.c.l.b16 %v318
    %v369 = vunpack.c.l.b16 %v319
    %v370 = vunpack.c.l.b16 %v320
    %v371 = vunpack.c.l.b16 %v321
    %v372 = vunpack.c.l.b16 %v322
    %v373 = vunpack.c.l.b16 %v323
    %v374 = vunpack.c.l.b16 %v324
    %v375 = vunpack.c.l.b16 %v325
    %v376 = vunpack.c.l.b16 %v326
    %v377 = vunpack.c.l.b16 %v327
    %v378 = vpack.c.b16 %v363, %v362
    %v379 = vpack.c.b16 %v365, %v364
    %v380 = vpack.c.b16 %v367, %v366
    %v381 = vpack.c.b16 %v369, %v368
    %v382 = vpack.c.b16 %v371, %v370
    %v383 = vpack.c.b16 %v373, %v372
    %v384 = vpack.c.b16 %v375, %v374
    %v385 = vpack.c.b16 %v377, %v376
    %394 = vmatprep.subr.bf16.mxu0 0
    %395 = vmatpush1.bf16.msra.mxu0 %v378
    %396 = vmatprep.subr.bf16.mxu0 0
    %397 = vmatpush1.bf16.msra.mxu0 %v379
    %398 = vmatprep.subr.bf16.mxu0 0
    %399 = vmatpush1.bf16.msra.mxu0 %v380
    %400 = vmatprep.subr.bf16.mxu0 0
    %401 = vmatpush1.bf16.msra.mxu0 %v381
    %402 = vmatprep.subr.bf16.mxu0 0
    %403 = vmatpush1.bf16.msra.mxu0 %v382
    %404 = vmatprep.subr.bf16.mxu0 0
    %405 = vmatpush1.bf16.msra.mxu0 %v383
    %406 = vmatprep.subr.bf16.mxu0 0
    %407 = vmatpush1.bf16.msra.mxu0 %v384
    %408 = vmatprep.subr.bf16.mxu0 0
    %409 = vmatpush1.bf16.msra.mxu0 %v385
    %410 = vmatprep.subr.bf16.mxu0 0
    %411 = vmatpush1.bf16.msra.mxu0 0
    %412 = vmatprep.subr.bf16.mxu0 0
    %413 = vmatpush1.bf16.msra.mxu0 0
    %414 = vmatprep.subr.bf16.mxu0 0
    %415 = vmatpush1.bf16.msra.mxu0 0
    %416 = vmatprep.subr.bf16.mxu0 0
    %417 = vmatpush1.bf16.msra.mxu0 0
    %418 = vmatprep.subr.bf16.mxu0 0
    %419 = vmatpush1.bf16.msra.mxu0 0
    %420 = vmatprep.subr.bf16.mxu0 0
    %421 = vmatpush1.bf16.msra.mxu0 0
    %422 = vmatprep.subr.bf16.mxu0 0
    %423 = vmatpush1.bf16.msra.mxu0 0
    %424 = vmatprep.subr.bf16.mxu0 0
    %425 = vmatpush1.bf16.msra.mxu0 0
    %426 = vmatprep.mubr.bf16.mxu0 0
    %427 = vmatmul.mubr.bf16.gmra.mrb[0].mxu0 %v345
    %v428 = vpop.f32.mrb[0].mxu0
    %v429 = vadd.f32 0.0, %v428
    %v430 = vpop.f32.mrb[0].mxu0
    %v431 = vpop.f32.mrb[0].mxu0
    %v432 = vpop.f32.mrb[0].mxu0
    %433 = vdwg.mxu0
    %v434 = vpack.c.bf16 %v429, %v429
    %v451 = vunpack.c.l.b16 %v328
    %v452 = vunpack.c.l.b16 %v329
    %v453 = vunpack.c.l.b16 %v330
    %v454 = vunpack.c.l.b16 %v331
    %v455 = vunpack.c.l.b16 %v332
    %v456 = vunpack.c.l.b16 %v333
    %v457 = vunpack.c.l.b16 %v334
    %v458 = vunpack.c.l.b16 %v335
    %v459 = vunpack.c.l.b16 %v336
    %v460 = vunpack.c.l.b16 %v337
    %v461 = vunpack.c.l.b16 %v338
    %v462 = vunpack.c.l.b16 %v339
    %v463 = vunpack.c.l.b16 %v340
    %v464 = vunpack.c.l.b16 %v341
    %v465 = vunpack.c.l.b16 %v342
    %v466 = vunpack.c.l.b16 %v343
    %v467 = vpack.c.b16 %v452, %v451
    %v468 = vpack.c.b16 %v454, %v453
    %v469 = vpack.c.b16 %v456, %v455
    %v470 = vpack.c.b16 %v458, %v457
    %v471 = vpack.c.b16 %v460, %v459
    %v472 = vpack.c.b16 %v462, %v461
    %v473 = vpack.c.b16 %v464, %v463
    %v474 = vpack.c.b16 %v466, %v465
    %483 = vmatprep.subr.bf16.mxu0 0
    %484 = vmatpush1.bf16.msra.mxu0 %v467
    %485 = vmatprep.subr.bf16.mxu0 0
    %486 = vmatpush1.bf16.msra.mxu0 %v468
    %487 = vmatprep.subr.bf16.mxu0 0
    %488 = vmatpush1.bf16.msra.mxu0 %v469
    %489 = vmatprep.subr.bf16.mxu0 0
    %490 = vmatpush1.bf16.msra.mxu0 %v470
    %491 = vmatprep.subr.bf16.mxu0 0
    %492 = vmatpush1.bf16.msra.mxu0 %v471
    %493 = vmatprep.subr.bf16.mxu0 0
    %494 = vmatpush1.bf16.msra.mxu0 %v472
    %495 = vmatprep.subr.bf16.mxu0 0
    %496 = vmatpush1.bf16.msra.mxu0 %v473
    %497 = vmatprep.subr.bf16.mxu0 0
    %498 = vmatpush1.bf16.msra.mxu0 %v474
    %499 = vmatprep.subr.bf16.mxu0 0
    %500 = vmatpush1.bf16.msra.mxu0 0
    %501 = vmatprep.subr.bf16.mxu0 0
    %502 = vmatpush1.bf16.msra.mxu0 0
    %503 = vmatprep.subr.bf16.mxu0 0
    %504 = vmatpush1.bf16.msra.mxu0 0
    %505 = vmatprep.subr.bf16.mxu0 0
    %506 = vmatpush1.bf16.msra.mxu0 0
    %507 = vmatprep.subr.bf16.mxu0 0
    %508 = vmatpush1.bf16.msra.mxu0 0
    %509 = vmatprep.subr.bf16.mxu0 0
    %510 = vmatpush1.bf16.msra.mxu0 0
    %511 = vmatprep.subr.bf16.mxu0 0
    %512 = vmatpush1.bf16.msra.mxu0 0
    %513 = vmatprep.subr.bf16.mxu0 0
    %514 = vmatpush1.bf16.msra.mxu0 0
    %515 = vmatprep.mubr.bf16.mxu0 0
    %516 = vmatmul.mubr.bf16.gmra.mrb[0].mxu0 %v345
    %v517 = vpop.f32.mrb[0].mxu0
    %v518 = vadd.f32 0.0, %v517
    %v519 = vpop.f32.mrb[0].mxu0
    %v520 = vpop.f32.mrb[0].mxu0
    %v521 = vpop.f32.mrb[0].mxu0
    %522 = vdwg.mxu0
    %vm523 = vcmask 64512
    %v525 = vsel %vm523, %v311, 0
    %vm527 = vcmask 1043456
    %v529 = vsel %vm527, %v434, 0
    %531 = vmatprep.subr.bf16.mxu0 0
    %532 = vmatpush1.bf16.msra.mxu0 %v529
    %533 = vmatprep.subr.bf16.mxu0 0
    %534 = vmatpush1.bf16.msra.mxu0 0
    %535 = vmatprep.subr.bf16.mxu0 0
    %536 = vmatpush1.bf16.msra.mxu0 0
    %537 = vmatprep.subr.bf16.mxu0 0
    %538 = vmatpush1.bf16.msra.mxu0 0
    %539 = vmatprep.subr.bf16.mxu0 0
    %540 = vmatpush1.bf16.msra.mxu0 0
    %541 = vmatprep.subr.bf16.mxu0 0
    %542 = vmatpush1.bf16.msra.mxu0 0
    %543 = vmatprep.subr.bf16.mxu0 0
    %544 = vmatpush1.bf16.msra.mxu0 0
    %545 = vmatprep.subr.bf16.mxu0 0
    %546 = vmatpush1.bf16.msra.mxu0 0
    %547 = vmatprep.subr.bf16.mxu0 0
    %548 = vmatpush1.bf16.msra.mxu0 0
    %549 = vmatprep.subr.bf16.mxu0 0
    %550 = vmatpush1.bf16.msra.mxu0 0
    %551 = vmatprep.subr.bf16.mxu0 0
    %552 = vmatpush1.bf16.msra.mxu0 0
    %553 = vmatprep.subr.bf16.mxu0 0
    %554 = vmatpush1.bf16.msra.mxu0 0
    %555 = vmatprep.subr.bf16.mxu0 0
    %556 = vmatpush1.bf16.msra.mxu0 0
    %557 = vmatprep.subr.bf16.mxu0 0
    %558 = vmatpush1.bf16.msra.mxu0 0
    %559 = vmatprep.subr.bf16.mxu0 0
    %560 = vmatpush1.bf16.msra.mxu0 0
    %561 = vmatprep.subr.bf16.mxu0 0
    %562 = vmatpush1.bf16.msra.mxu0 0
    %563 = vmatprep.mubr.bf16.mxu0 0
    %564 = vmatmul.mubr.bf16.gmra.mrb[0].mxu0 %v525
    %v565 = vpop.f32.mrb[0].mxu0
    %v566 = vadd.f32 %v518, %v565
    %v567 = vpop.f32.mrb[0].mxu0
    %v568 = vpop.f32.mrb[0].mxu0
    %v569 = vpop.f32.mrb[0].mxu0
    %570 = vdwg.mxu0
    %v572 = vlaneseq
    %v573 = vshrl.u32 %v572, 7
    %v574 = vsub.s32 0, %v573
    %v575 = vrot.slane %v344, %v574
    %v577 = vadd.f32 %v566, %v575
    %578 = vst [vmem:[#allocation10] sm:$0xff] %v577
    // Predicated region
    $region46: #{tpu_custom_call.1} parent=1 // pred_check
      _
    $region47: #{tpu_custom_call.1} parent=1 // pred_check_branch
      %580 = sbr.rel (0) target = $region49
    $region48: #{tpu_custom_call.1} parent=1 // pred_region
      %s582 = ssub.s32 128, 128
      %583 = vsyncadd [#allocation4], %s582
      %s585 = sshll.u32 [#allocation10], 4
      %s586 = int_to_ptr.vmem [resolvable:$true] %s585
      %588 = dma.vmem_to_hbm [thread:$0]  %s586, 128, %s7, [#allocation4]
    $region49: #{tpu_custom_call.1} parent=1 // pred_fallthru
      _
    // Predicated region
    $region50: #{tpu_custom_call.1} parent=1 // pred_check
      _
    $region51: #{tpu_custom_call.1} parent=1 // pred_check_branch
      %590 = sbr.rel (0) target = $region53
    $region52: #{tpu_custom_call.1} parent=1 // pred_region
      %591 = dma.done [#allocation4], 128
    $region53: #{tpu_custom_call.1} parent=1 // pred_fallthru
      _
    %592 = vsyncpa [#allocation3], 1
    %593 = vsyncpa [#allocation6], 1
    %594 = vsyncpa [#allocation9], 1
    %595 = vsyncpa [#allocation4], 1

</llo_original>
